<compile_context>
chip_gen: v7x
topology: tpu7x:2x2x1
jax: 0.10.0
libtpu: 0.0.40
codegen_flags: <defaults>
</compile_context>

<pallas_src>
import functools

import numpy as np

import jax
import jax.numpy as jnp
from jax.experimental import pallas as pl
from jax.experimental.pallas import tpu as pltpu


def _vmem_capacity_bytes() -> int:
    try:
        return int(pltpu.get_tpu_info().vmem_capacity_bytes)
    except Exception:
        return 64 * 1024 * 1024  # conservative default (v7x-sized)


def _vmem_budget():
    cap = _vmem_capacity_bytes()
    # Explicit scoped-VMEM limit (scoped default is only 16/32 MiB on v5e/v6e).
    vmem_limit = min(96 * 1024 * 1024, (cap * 3) // 4)   # 96 MiB v5e/v6e, 48 MiB v7x
    # Per-array block budget: ~6 double-buffered pipeline slabs + in-kernel
    # temporaries => keep each block at ~1/16 of the limit.
    block_budget = vmem_limit // 16                       # 6 MiB v5e/v6e, 3 MiB v7x
    return vmem_limit, block_budget


def _jacobi_kernel(ck_ref, cn_ref, f_ref, u_ref, o_ref, *, h, W, H):
    """One (Bb, W*H) block: each row is one flattened (W, H) plane."""
    n = W * H
    u = u_ref[...]
    f = f_ref[...]

    # 4-neighbour stencil via XLU rolls on the flattened (row-major) plane
    # axis.  result[p] of roll(u, s) is u[(p - s) mod n], so:
    #   shift 1     -> u[i, j-1]      shift n-1   -> u[i, j+1]
    #   shift H     -> u[i-1, j]      shift n-H   -> u[i+1, j]
    # Wrap-around garbage only hits row 0 / row W-1 / col 0 / col H-1, all of
    # which are overwritten by the DB/NB fixups below (requires W,H >= 3).
    acc = pltpu.roll(u, 1, axis=1)
    acc = acc + pltpu.roll(u, n - 1, axis=1)
    acc = acc + pltpu.roll(u, H, axis=1)
    acc = acc + pltpu.roll(u, n - H, axis=1)
    v = 0.25 * acc - (h * h / 4.0) * f

    # update_DB + update_NB column fixup in one multiply-add:
    #   col H-1 -> 0  ;  col 0 <- col 1
    # ck/cn are (1, n) per-lane coefficient vectors broadcast over batch rows.
    v = v * ck_ref[...] + pltpu.roll(v, n - 1, axis=1) * cn_ref[...]

    # update_NB row fixups: row 0 <- row 1, then row W-1 <- row W-2 (row W-2 is
    # untouched by the row-0 fixup since W >= 3, matching PyTorch ordering).
    p = jax.lax.broadcasted_iota(jnp.int32, v.shape, 1)
    v = jnp.where(p < H, pltpu.roll(v, n - H, axis=1), v)
    v = jnp.where(p >= n - H, pltpu.roll(v, H, axis=1), v)

    # Single full-tile, lane-dense store.
    o_ref[...] = v.astype(o_ref.dtype)


def jacobi2d_update(f, dbc, nbc, u, h, *, donate_u=False):
    """f, dbc, nbc, u: (B, 1, W, H) float32.  Returns (B, 1, W, H).

    dbc / nbc are accepted for API parity with the PyTorch forward but are
    dead inputs (update_DB / update_NB ignore them) and are never DMA'd.
    """
    del dbc, nbc  # dead inputs
    B, C, W, H = u.shape
    assert C == 1
    assert W >= 3 and H >= 3, "Jacobi stencil expects at least a 3x3 grid"
    n = W * H

    # Free row-major reshapes: no wrapper-side HBM traffic.
    f2 = f.reshape(B, n)
    u2 = u.reshape(B, n)

    # Per-lane column coefficients (trace-time constants, ~2 KiB of HBM).
    #   ck = 0 at cols {0, H-1}, 1 elsewhere ; cn = 1 at col 0, 0 elsewhere.
    col = np.arange(n, dtype=np.int64) % H
    ck = np.where((col == 0) | (col == H - 1), 0.0, 1.0).astype(np.float32)
    cn = np.where(col == 0, 1.0, 0.0).astype(np.float32)
    ck = jnp.asarray(ck).reshape(1, n)
    cn = jnp.asarray(cn).reshape(1, n)

    # Generation-aware block sizing.
    vmem_limit, block_budget = _vmem_budget()
    row_bytes = n * u2.dtype.itemsize
    rows_fit = max(1, block_budget // row_bytes)
    rows_target = max(1, pl.cdiv(B, 4))   # aim for >= 4 grid steps (>=2 per TC on v7x)
    Bb = min(rows_fit, rows_target)
    if Bb >= B:
        Bb = B                            # single block: equals full dim, always legal
    else:
        Bb = max(8, (Bb // 8) * 8)        # sublane-tile friendly block rows
        if Bb >= B:
            Bb = B
    grid = (pl.cdiv(B, Bb),)              # ragged B -> partial last block (no padding)

    data_spec = pl.BlockSpec((Bb, n), lambda b: (b, 0))
    coef_spec = pl.BlockSpec((1, n), lambda b: (0, 0))

    kernel = functools.partial(_jacobi_kernel, h=float(h), W=W, H=H)
    out = pl.pallas_call(
        kernel,
        out_shape=jax.ShapeDtypeStruct((B, n), u2.dtype),
        grid=grid,
        in_specs=[coef_spec, coef_spec, data_spec, data_spec],
        out_specs=data_spec,
        input_output_aliases=({3: 0} if donate_u else {}),
        compiler_params=pltpu.CompilerParams(
            dimension_semantics=("parallel",),
            vmem_limit_bytes=int(vmem_limit),
        ),
    )(ck, cn, f2, u2)

    return out.reshape(B, 1, W, H)


def jacobi2d_update_ref(f, dbc, nbc, u, h):
    """Pure-JAX reference mirroring the PyTorch forward (same op order)."""
    del dbc, nbc
    up = jnp.pad(u, ((0, 0), (0, 0), (1, 1), (1, 1)))
    conv = 0.25 * (up[:, :, :-2, 1:-1] + up[:, :, 2:, 1:-1]
                   + up[:, :, 1:-1, :-2] + up[:, :, 1:-1, 2:])
    v = conv - (h * h / 4.0) * f
    v = v.at[:, :, :, -1].set(0.0)            # update_DB
    v = v.at[:, :, 0, :].set(v[:, :, 1, :])   # update_NB (row 0)
    v = v.at[:, :, :, 0].set(v[:, :, :, 1])   # update_NB (col 0)
    v = v.at[:, :, -1, :].set(v[:, :, -2, :]) # update_NB (row W-1)
    return v


if __name__ == "__main__":
    h = 0.1  # grid spacing parameter of Jacobi2dUpdate(h)
    key = jax.random.PRNGKey(0)

    def make(B, W, H, k):
        kf, kd, kn, ku = jax.random.split(k, 4)
        f = jax.random.normal(kf, (B, 1, W, H), dtype=jnp.float32)
        dbc = jax.random.normal(kd, (B, 1, W, H), dtype=jnp.float32)
        nbc = jax.random.normal(kn, (B, 1, W, H), dtype=jnp.float32)
        u = jax.random.normal(ku, (B, 1, W, H), dtype=jnp.float32)
        return f, dbc, nbc, u

    k1, k2, k3, k4 = jax.random.split(key, 4)

    # Nominal module shapes: batch=2, C=1, 16x16 plane.
    f, dbc, nbc, u = make(2, 16, 16, k1)
    out = jax.block_until_ready(jacobi2d_update(f, dbc, nbc, u, h))
    ref = jacobi2d_update_ref(f, dbc, nbc, u, h)
    assert out.shape == (2, 1, 16, 16)
    assert jnp.allclose(out, ref, atol=1e-5, rtol=1e-5)

    # Multi-block grid (B=128 -> 4 "parallel" grid steps).
    f, dbc, nbc, u = make(128, 16, 16, k2)
    out = jax.block_until_ready(jacobi2d_update(f, dbc, nbc, u, h))
    ref = jacobi2d_update_ref(f, dbc, nbc, u, h)
    assert jnp.allclose(out, ref, atol=1e-5, rtol=1e-5)

    # Ragged batch: B not a multiple of the block -> partial last block handled
    # by Pallas bounds masking (no wrapper-side pad / slice HBM passes).
    f, dbc, nbc, u = make(20, 16, 16, k3)
    out = jax.block_until_ready(jacobi2d_update(f, dbc, nbc, u, h))
    ref = jacobi2d_update_ref(f, dbc, nbc, u, h)
    assert jnp.allclose(out, ref, atol=1e-5, rtol=1e-5)

    # Donated / aliased u buffer (in-place style update).
    f, dbc, nbc, u = make(5, 16, 16, k4)
    ref = jacobi2d_update_ref(f, dbc, nbc, u, h)
    out = jax.block_until_ready(jacobi2d_update(f, dbc, nbc, u, h, donate_u=True))
    assert jnp.allclose(out, ref, atol=1e-5, rtol=1e-5)

    print("KERNEL_OK")
</pallas_src>

<mosaic_0001>
module attributes {stable_mosaic.version = 11 : i64} {
  func.func @_jacobi_kernel(%arg0: i32, %arg1: memref<1x256xf32, #tpu.memory_space<vmem>>, %arg2: memref<1x256xf32, #tpu.memory_space<vmem>>, %arg3: memref<2x256xf32, #tpu.memory_space<vmem>>, %arg4: memref<2x256xf32, #tpu.memory_space<vmem>>, %arg5: memref<2x256xf32, #tpu.memory_space<vmem>>) attributes {dimension_semantics = [#tpu.dimension_semantics<parallel>], iteration_bounds = array<i64: 1>, scalar_prefetch = 0 : i64, scratch_operands = 0 : i64, tpu.core_type = #tpu.core_type<tc>, window_params = [{pipeline_mode = #tpu.pipeline_mode<synchronous>, transform_indices = @transform_0, window_bounds = array<i64: 1, 256>}, {pipeline_mode = #tpu.pipeline_mode<synchronous>, transform_indices = @transform_1, window_bounds = array<i64: 1, 256>}, {transform_indices = @transform_2, window_bounds = array<i64: 2, 256>}, {transform_indices = @transform_3, window_bounds = array<i64: 2, 256>}, {transform_indices = @transform_4, window_bounds = array<i64: 2, 256>}]} {
    %c0 = arith.constant 0 : index
    %c0_0 = arith.constant 0 : index
    %0 = vector.load %arg4[%c0, %c0_0] : memref<2x256xf32, #tpu.memory_space<vmem>>, vector<2x256xf32>
    %c0_1 = arith.constant 0 : index
    %c0_2 = arith.constant 0 : index
    %1 = vector.load %arg3[%c0_1, %c0_2] : memref<2x256xf32, #tpu.memory_space<vmem>>, vector<2x256xf32>
    %c1_i32 = arith.constant 1 : i32
    %2 = tpu.dynamic_rotate %0 by %c1_i32 dim 1 : vector<2x256xf32>, i32 -> vector<2x256xf32>
    %c255_i32 = arith.constant 255 : i32
    %3 = tpu.dynamic_rotate %0 by %c255_i32 dim 1 : vector<2x256xf32>, i32 -> vector<2x256xf32>
    %4 = arith.addf %2, %3 : vector<2x256xf32>
    %c16_i32 = arith.constant 16 : i32
    %5 = tpu.dynamic_rotate %0 by %c16_i32 dim 1 : vector<2x256xf32>, i32 -> vector<2x256xf32>
    %6 = arith.addf %4, %5 : vector<2x256xf32>
    %c240_i32 = arith.constant 240 : i32
    %7 = tpu.dynamic_rotate %0 by %c240_i32 dim 1 : vector<2x256xf32>, i32 -> vector<2x256xf32>
    %8 = arith.addf %6, %7 : vector<2x256xf32>
    %cst = arith.constant 2.500000e-01 : f32
    %9 = vector.broadcast %cst : f32 to vector<2x256xf32>
    %10 = arith.mulf %9, %8 : vector<2x256xf32>
    %cst_3 = arith.constant 2.500000e-03 : f32
    %11 = vector.broadcast %cst_3 : f32 to vector<2x256xf32>
    %12 = arith.mulf %11, %1 : vector<2x256xf32>
    %13 = arith.subf %10, %12 : vector<2x256xf32>
    %c0_4 = arith.constant 0 : index
    %c0_5 = arith.constant 0 : index
    %14 = vector.load %arg1[%c0_4, %c0_5] : memref<1x256xf32, #tpu.memory_space<vmem>>, vector<1x256xf32>
    %15 = vector.broadcast %14 : vector<1x256xf32> to vector<2x256xf32>
    %16 = arith.mulf %13, %15 : vector<2x256xf32>
    %c255_i32_6 = arith.constant 255 : i32
    %17 = tpu.dynamic_rotate %13 by %c255_i32_6 dim 1 : vector<2x256xf32>, i32 -> vector<2x256xf32>
    %c0_7 = arith.constant 0 : index
    %c0_8 = arith.constant 0 : index
    %18 = vector.load %arg2[%c0_7, %c0_8] : memref<1x256xf32, #tpu.memory_space<vmem>>, vector<1x256xf32>
    %19 = vector.broadcast %18 : vector<1x256xf32> to vector<2x256xf32>
    %20 = arith.mulf %17, %19 : vector<2x256xf32>
    %21 = arith.addf %16, %20 : vector<2x256xf32>
    %22 = tpu.iota {dimensions = array<i32: 1>} : vector<2x256xi32>
    %c16_i32_9 = arith.constant 16 : i32
    %23 = vector.broadcast %c16_i32_9 : i32 to vector<2x256xi32>
    %24 = arith.cmpi slt, %22, %23 : vector<2x256xi32>
    %c240_i32_10 = arith.constant 240 : i32
    %25 = tpu.dynamic_rotate %21 by %c240_i32_10 dim 1 : vector<2x256xf32>, i32 -> vector<2x256xf32>
    %26 = arith.select %24, %25, %21 : vector<2x256xi1>, vector<2x256xf32>
    %c240_i32_11 = arith.constant 240 : i32
    %27 = vector.broadcast %c240_i32_11 : i32 to vector<2x256xi32>
    %28 = arith.cmpi sge, %22, %27 : vector<2x256xi32>
    %c16_i32_12 = arith.constant 16 : i32
    %29 = tpu.dynamic_rotate %26 by %c16_i32_12 dim 1 : vector<2x256xf32>, i32 -> vector<2x256xf32>
    %30 = arith.select %28, %29, %26 : vector<2x256xi1>, vector<2x256xf32>
    %c0_13 = arith.constant 0 : index
    %c0_14 = arith.constant 0 : index
    %31 = vector.load %arg5[%c0_13, %c0_14] : memref<2x256xf32, #tpu.memory_space<vmem>>, vector<2x256xf32>
    tpu.vector_store %arg5[%c0_13, %c0_14], %30 {strides = array<i32>} : memref<2x256xf32, #tpu.memory_space<vmem>>, vector<2x256xf32>,
    return
  }
  func.func @transform_0(%arg0: i32) -> (i32, i32) {
    %c0_i32 = arith.constant 0 : i32
    %c0_i32_0 = arith.constant 0 : i32
    %c0_i32_1 = arith.constant 0 : i32
    return %c0_i32, %c0_i32_0 : i32, i32
  }
  func.func @transform_1(%arg0: i32) -> (i32, i32) {
    %c0_i32 = arith.constant 0 : i32
    %c0_i32_0 = arith.constant 0 : i32
    %c0_i32_1 = arith.constant 0 : i32
    return %c0_i32, %c0_i32_0 : i32, i32
  }
  func.func @transform_2(%arg0: i32) -> (i32, i32) {
    %c0_i32 = arith.constant 0 : i32
    %c0_i32_0 = arith.constant 0 : i32
    return %arg0, %c0_i32 : i32, i32
  }
  func.func @transform_3(%arg0: i32) -> (i32, i32) {
    %c0_i32 = arith.constant 0 : i32
    %c0_i32_0 = arith.constant 0 : i32
    return %arg0, %c0_i32 : i32, i32
  }
  func.func @transform_4(%arg0: i32) -> (i32, i32) {
    %c0_i32 = arith.constant 0 : i32
    %c0_i32_0 = arith.constant 0 : i32
    return %arg0, %c0_i32 : i32, i32
  }
}

</mosaic_0001>

<llo_original>
// kernel: tpu_custom_call.1
$region0: #{tpu_custom_call.1}
  #allocation0 [shape = 'u32[]', space=smem, size = 0x4, offset = 0x4, fixed_abs, tag = 'smem constant byte address 0x4 - core index']
  #allocation1 [shape = 'u32[144,128]{1,0:T(1,128)}', space=vmem, size = 0x12000, scoped, tag = 'internal scratch']
  %s0 = inlined_call_operand.hbm [shape: f32[1,256], index: 0, kind: input, shape index: {}]
  %s1 = inlined_call_operand.vmem [shape: f32[1,256], index: 1, kind: input, shape index: {}]
  %s2 = inlined_call_operand.vmem [shape: f32[2,256], index: 2, kind: input, shape index: {}]
  %s3 = inlined_call_operand.vmem [shape: f32[2,256], index: 3, kind: input, shape index: {}]
  %s4 = inlined_call_operand.hbm [shape: f32[2,256], index: 4, kind: output, shape index: {}]
  %s5 = sld [smem:[#allocation0]]
  $region30: #{tpu_custom_call.1} parent=0
    _
  %s7 = ssub.s32 1, %s5
  %s8 = scalar_select 0, %s7, %s5
  $region1: #{tpu_custom_call.1} parent=0
    #allocation2 [shape = 'u8[1024]{0}', space=vmem, size = 0x400, scoped, tag = 'input window, operand 0, single buffered']
    #allocation3 [shape = 's32[1]{0}', space=sflag, size = 0x4, scoped, tag = 'scoped memory for tpu_custom_call.1']
    #allocation4 [shape = 's32[1]{0}', space=sflag, size = 0x4, scoped, tag = 'scoped memory for tpu_custom_call.1']
    #allocation5 [shape = 'u8[2048]{0}', space=vmem, size = 0x800, scoped, tag = 'output window, operand 0, single buffered']
    %9 = vsyncpa [#allocation3], 0
    %10 = vsyncpa [#allocation4], 0
    // Predicated region
    $region2: #{tpu_custom_call.1} parent=1 // pred_check
      _
    $region3: #{tpu_custom_call.1} parent=1 // pred_check_branch
      %12 = sbr.rel (0) target = $region5
    $region4: #{tpu_custom_call.1} parent=1 // pred_region
      %s14 = ssub.s32 32, 32
      %15 = vsyncadd [#allocation3], %s14
      %s17 = sshll.u32 [#allocation2], 4
      %s18 = int_to_ptr.vmem [resolvable:$true] %s17
      %20 = dma.hbm_to_vmem [thread:$0]  %s0, 32, %s18, [#allocation3]
    $region5: #{tpu_custom_call.1} parent=1 // pred_fallthru
      _
    // Predicated region
    $region6: #{tpu_custom_call.1} parent=1 // pred_check
      _
    $region7: #{tpu_custom_call.1} parent=1 // pred_check_branch
      %22 = sbr.rel (0) target = $region9
    $region8: #{tpu_custom_call.1} parent=1 // pred_region
      _
    $region9: #{tpu_custom_call.1} parent=1 // pred_fallthru
      _
    // Predicated region
    $region10: #{tpu_custom_call.1} parent=1 // pred_check
      _
    $region11: #{tpu_custom_call.1} parent=1 // pred_check_branch
      %24 = sbr.rel (0) target = $region13
    $region12: #{tpu_custom_call.1} parent=1 // pred_region
      _
    $region13: #{tpu_custom_call.1} parent=1 // pred_fallthru
      _
    // Predicated region
    $region14: #{tpu_custom_call.1} parent=1 // pred_check
      _
    $region15: #{tpu_custom_call.1} parent=1 // pred_check_branch
      %26 = sbr.rel (0) target = $region17
    $region16: #{tpu_custom_call.1} parent=1 // pred_region
      _
    $region17: #{tpu_custom_call.1} parent=1 // pred_fallthru
      _
    // Predicated region
    $region18: #{tpu_custom_call.1} parent=1 // pred_check
      _
    $region19: #{tpu_custom_call.1} parent=1 // pred_check_branch
      %28 = sbr.rel (0) target = $region21
    $region20: #{tpu_custom_call.1} parent=1 // pred_region
      %29 = dma.done [#allocation3], 32
    $region21: #{tpu_custom_call.1} parent=1 // pred_fallthru
      _
    %v30 = vld [vmem:[%s3] sm:$0xf]
    %v31 = vld [vmem:[%s2] sm:$0xf]
    %v34 = vunpack.c.l.s4 1983009808
    %v35 = vunpack.c.0.s8 %v34
    %v36 = vlaneseq
    %v37 = vshrl.u32 %v36, 7
    %v38 = vsub.s32 %v35, %v37
    %v39 = vrot.slane %v30, %v38
    %v40 = vcombine.high %v39, %v39
    %43 = vrot.lane.b32.xlu0 %v39, 1
    %v44 = vpop.permute.xlu0 %43
    %45 = vrot.lane.b32.xlu0 %v40, 1
    %v46 = vpop.permute.xlu0 %45
    %v47 = vlaneseq
    %v48 = vand.u32 %v47, 127
    %vm49 = vcmp.lt.s32.totalorder %v48, 1
    %v50 = vsel %vm49, %v44, %v46
    %v51 = vsel %vm49, %v46, %v44
    %52 = vrot.lane.b32.xlu0 %v39, 127
    %v53 = vpop.permute.xlu0 %52
    %54 = vrot.lane.b32.xlu0 %v40, 127
    %v55 = vpop.permute.xlu0 %54
    %vm56 = vcmp.lt.s32.totalorder %v48, 127
    %v57 = vsel %vm56, %v53, %v55
    %v58 = vsel %vm56, %v55, %v53
    %v59 = vadd.f32 %v51, %v57
    %v60 = vadd.f32 %v50, %v58
    %61 = vrot.lane.b32.xlu0 %v39, 16
    %v62 = vpop.permute.xlu0 %61
    %63 = vrot.lane.b32.xlu0 %v40, 16
    %v64 = vpop.permute.xlu0 %63
    %vm65 = vcmp.lt.s32.totalorder %v48, 16
    %v66 = vsel %vm65, %v62, %v64
    %v67 = vsel %vm65, %v64, %v62
    %v68 = vadd.f32 %v59, %v67
    %v69 = vadd.f32 %v60, %v66
    %70 = vrot.lane.b32.xlu0 %v39, 112
    %v71 = vpop.permute.xlu0 %70
    %72 = vrot.lane.b32.xlu0 %v40, 112
    %v73 = vpop.permute.xlu0 %72
    %vm74 = vcmp.lt.s32.totalorder %v48, 112
    %v75 = vsel %vm74, %v71, %v73
    %v76 = vsel %vm74, %v73, %v71
    %v77 = vadd.f32 %v68, %v75
    %v78 = vadd.f32 %v69, %v76
    %v79 = vmul.f32 %v77, 0.25
    %v80 = vmul.f32 %v78, 0.25
    %v81 = vmul.f32 %v31, 0.0025
    %v84 = vunpack.c.l.s4 1983009808
    %v85 = vunpack.c.0.s8 %v84
    %v86 = vlaneseq
    %v87 = vshrl.u32 %v86, 7
    %v88 = vsub.s32 %v85, %v87
    %v89 = vrot.slane %v81, %v88
    %v90 = vcombine.high %v89, %v89
    %v93 = vsub.f32 %v79, %v89
    %v94 = vsub.f32 %v80, %v90
    %v95 = vld [vmem:[#allocation2] sm:$0x3]
    %v97 = vlaneseq
    %v98 = vshrl.u32 %v97, 7
    %v99 = vsub.s32 0, %v98
    %v100 = vrot.slane %v95, %v99
    %v101 = vlaneseq
    %v102 = vshrl.u32 %v101, 7
    %v103 = vsub.s32 1, %v102
    %v104 = vrot.slane %v95, %v103
    %v107 = vmul.f32 %v93, %v100
    %v108 = vmul.f32 %v94, %v104
    %109 = vrot.lane.b32.xlu0 %v93, 127
    %v110 = vpop.permute.xlu0 %109
    %111 = vrot.lane.b32.xlu0 %v94, 127
    %v112 = vpop.permute.xlu0 %111
    %v113 = vsel %vm56, %v110, %v112
    %v114 = vsel %vm56, %v112, %v110
    %v115 = vld [vmem:[%s1] sm:$0x3]
    %v117 = vlaneseq
    %v118 = vshrl.u32 %v117, 7
    %v119 = vsub.s32 0, %v118
    %v120 = vrot.slane %v115, %v119
    %v121 = vlaneseq
    %v122 = vshrl.u32 %v121, 7
    %v123 = vsub.s32 1, %v122
    %v124 = vrot.slane %v115, %v123
    %v127 = vmul.f32 %v113, %v120
    %v128 = vmul.f32 %v114, %v124
    %v129 = vadd.f32 %v107, %v127
    %v130 = vadd.f32 %v108, %v128
    %v131 = vadd.s32 %v48, 128
    %vm132 = vcmp.lt.s32.totalorder %v131, 16
    %133 = vrot.lane.b32.xlu0 %v129, 112
    %v134 = vpop.permute.xlu0 %133
    %135 = vrot.lane.b32.xlu0 %v130, 112
    %v136 = vpop.permute.xlu0 %135
    %v137 = vsel %vm74, %v134, %v136
    %v138 = vsel %vm74, %v136, %v134
    %v139 = vsel %vm65, %v137, %v129
    %v140 = vsel %vm132, %v138, %v130
    %vm141 = vcmp.ge.s32.totalorder %v48, 240
    %vm142 = vcmp.ge.s32.totalorder %v131, 240
    %143 = vrot.lane.b32.xlu0 %v139, 16
    %v144 = vpop.permute.xlu0 %143
    %145 = vrot.lane.b32.xlu0 %v140, 16
    %v146 = vpop.permute.xlu0 %145
    %v147 = vsel %vm65, %v144, %v146
    %v148 = vsel %vm65, %v146, %v144
    %v149 = vsel %vm141, %v148, %v139
    %v150 = vsel %vm142, %v147, %v140
    %v153 = vcombine.low %v149, %v150
    %v155 = vunpack.c.l.s4 1983009808
    %v156 = vunpack.c.0.s8 %v155
    %v157 = vlaneseq
    %v158 = vshrl.u32 %v157, 7
    %v159 = vsub.s32 %v156, %v158
    %v160 = vrot.slane %v153, %v159
    %162 = vst [vmem:[#allocation5] sm:$0xf] %v160
    // Predicated region
    $region22: #{tpu_custom_call.1} parent=1 // pred_check
      _
    $region23: #{tpu_custom_call.1} parent=1 // pred_check_branch
      %164 = sbr.rel (0) target = $region25
    $region24: #{tpu_custom_call.1} parent=1 // pred_region
      %s166 = ssub.s32 64, 64
      %167 = vsyncadd [#allocation4], %s166
      %s169 = sshll.u32 [#allocation5], 4
      %s170 = int_to_ptr.vmem [resolvable:$true] %s169
      %172 = dma.vmem_to_hbm [thread:$0]  %s170, 64, %s4, [#allocation4]
    $region25: #{tpu_custom_call.1} parent=1 // pred_fallthru
      _
    // Predicated region
    $region26: #{tpu_custom_call.1} parent=1 // pred_check
      _
    $region27: #{tpu_custom_call.1} parent=1 // pred_check_branch
      %174 = sbr.rel (0) target = $region29
    $region28: #{tpu_custom_call.1} parent=1 // pred_region
      %175 = dma.done [#allocation4], 64
    $region29: #{tpu_custom_call.1} parent=1 // pred_fallthru
      _
    %176 = vsyncpa [#allocation3], 1
    %177 = vsyncpa [#allocation4], 1

</llo_original>
